<compile_context>
chip_gen: v7x
topology: tpu7x:2x2x1
jax: 0.10.0
libtpu: 0.0.40
codegen_flags: <defaults>
</compile_context>

<pallas_src>
import jax
import jax.numpy as jnp
from jax.experimental import pallas as pl
from jax.experimental.pallas import tpu as pltpu


def _mlp5_kernel(xt_ref,
                 w1_ref, b1_ref,
                 w2_ref, b2_ref,
                 w3_ref, b3_ref,
                 w4_ref, b4_ref,
                 w5_ref, b5_ref,
                 ot_ref):
    """One batch tile. Activations are (features, TB): batch on the lane axis."""

    def layer(h, w_ref, b_ref):
        # (out, in) @ (in, TB) -> (out, TB); bf16 MXU inputs, f32 accumulation.
        z = jnp.dot(w_ref[...], h, preferred_element_type=jnp.float32)
        z = z + b_ref[...]                      # (out, 1) broadcast over lanes
        return jnp.maximum(z, 0.0).astype(jnp.bfloat16)

    h = xt_ref[...]                             # (d_in, TB) bf16
    h = layer(h, w1_ref, b1_ref)
    h = layer(h, w2_ref, b2_ref)
    h = layer(h, w3_ref, b3_ref)
    h = layer(h, w4_ref, b4_ref)

    # fc5: out_features == 1.  Use VPU multiply + cross-sublane reduce instead
    # of an MXU pass; result is already lane-dense (1, TB).
    o = jnp.sum(h.astype(jnp.float32) * w5_ref[...], axis=0, keepdims=True)
    ot_ref[...] = o + b5_ref[...]


def five_layer_net(x, params, *, tb=256):
    """x: (B, input_size) float. params: PyTorch layout [(W (out,in), b (out,))]."""
    B, d_in = x.shape
    n_tiles = pl.cdiv(B, tb)
    Bp = n_tiles * tb

    # Feature-major / batch-on-lanes layout, batch padded to a tile multiple,
    # activations shipped as bf16 (halves input DMA bytes).
    xt = jnp.zeros((d_in, Bp), jnp.bfloat16).at[:, :B].set(x.T.astype(jnp.bfloat16))

    # Kernel-layout params: fc1..fc4 weights bf16 (MXU), biases f32 columns;
    # fc5 as an f32 column (VPU path) + (1, 1) bias.
    flat = []
    for w, b in params[:-1]:
        flat.append(w.astype(jnp.bfloat16))                  # (out, in)
        flat.append(b.reshape(-1, 1).astype(jnp.float32))    # (out, 1)
    w5, b5 = params[-1]
    flat.append(w5.reshape(-1, 1).astype(jnp.float32))       # (H4, 1)
    flat.append(b5.reshape(1, 1).astype(jnp.float32))        # (1, 1)

    in_specs = [pl.BlockSpec((d_in, tb), lambda i: (0, i))]
    # Weights/biases: full-array blocks, constant index_map -> fetched once,
    # VMEM-resident across all grid steps.
    for p in flat:
        in_specs.append(pl.BlockSpec(p.shape, lambda i: (0, 0)))
    out_spec = pl.BlockSpec((1, tb), lambda i: (0, i))

    dims = [d_in] + [w.shape[0] for w, _ in params]
    flops = 2 * Bp * sum(a * b for a, b in zip(dims[:-1], dims[1:]))
    bytes_accessed = int(xt.size * 2
                         + sum(p.size * p.dtype.itemsize for p in flat)
                         + Bp * 4)

    out_t = pl.pallas_call(
        _mlp5_kernel,
        out_shape=jax.ShapeDtypeStruct((1, Bp), jnp.float32),
        grid=(n_tiles,),
        in_specs=in_specs,
        out_specs=out_spec,
        compiler_params=pltpu.CompilerParams(
            dimension_semantics=("parallel",)),
        cost_estimate=pl.CostEstimate(
            flops=flops, transcendentals=0, bytes_accessed=bytes_accessed),
    )(xt, *flat)

    return out_t[:, :B].T                                    # (B, 1) f32


def init_params(key, input_size, hidden_sizes):
    """nn.Linear-style U(-1/sqrt(in), 1/sqrt(in)) init, PyTorch (out, in) layout."""
    dims = [input_size] + list(hidden_sizes) + [1]
    params = []
    for i in range(len(dims) - 1):
        di, do = dims[i], dims[i + 1]
        key, kw, kb = jax.random.split(key, 3)
        bound = 1.0 / (di ** 0.5)
        w = jax.random.uniform(kw, (do, di), jnp.float32, -bound, bound)
        b = jax.random.uniform(kb, (do,), jnp.float32, -bound, bound)
        params.append((w, b))
    return params


def reference_forward(x, params):
    """Plain-JAX reference with the same numerics (bf16 matmuls, f32 accum)."""
    h = x.astype(jnp.bfloat16)
    for w, b in params[:-1]:
        z = jnp.dot(h, w.T.astype(jnp.bfloat16),
                    preferred_element_type=jnp.float32) + b[None, :]
        h = jnp.maximum(z, 0.0).astype(jnp.bfloat16)
    w5, b5 = params[-1]
    return jnp.dot(h.astype(jnp.float32), w5.T) + b5[None, :]


if __name__ == "__main__":
    # Shapes consistent with the module: input_size=32, 4 hidden sizes, scalar
    # output.  Batch 512 -> 2 grid steps of TB=256 (exercises the pipeline).
    batch = 512
    input_size = 32
    hidden_sizes = [32, 64, 64, 32]

    key = jax.random.PRNGKey(0)
    key, kx = jax.random.split(key)
    x = jax.random.normal(kx, (batch, input_size), jnp.float32)
    params = init_params(key, input_size, hidden_sizes)

    out = jax.block_until_ready(five_layer_net(x, params, tb=256))
    ref = reference_forward(x, params)

    assert out.shape == (batch, 1), out.shape
    assert jnp.allclose(out, ref, atol=1e-2, rtol=1e-2), (
        "mismatch vs reference, max abs err = "
        f"{float(jnp.max(jnp.abs(out - ref)))}")

    print("KERNEL_OK")
</pallas_src>

<mosaic_0001>
module attributes {stable_mosaic.version = 11 : i64} {
  func.func @_mlp5_kernel(%arg0: i32, %arg1: memref<32x256xbf16, #tpu.memory_space<vmem>>, %arg2: memref<32x32xbf16, #tpu.memory_space<vmem>>, %arg3: memref<32x1xf32, #tpu.memory_space<vmem>>, %arg4: memref<64x32xbf16, #tpu.memory_space<vmem>>, %arg5: memref<64x1xf32, #tpu.memory_space<vmem>>, %arg6: memref<64x64xbf16, #tpu.memory_space<vmem>>, %arg7: memref<64x1xf32, #tpu.memory_space<vmem>>, %arg8: memref<32x64xbf16, #tpu.memory_space<vmem>>, %arg9: memref<32x1xf32, #tpu.memory_space<vmem>>, %arg10: memref<32x1xf32, #tpu.memory_space<vmem>>, %arg11: memref<1x1xf32, #tpu.memory_space<vmem>>, %arg12: memref<1x256xf32, #tpu.memory_space<vmem>>) attributes {dimension_semantics = [#tpu.dimension_semantics<parallel>], iteration_bounds = array<i64: 2>, scalar_prefetch = 0 : i64, scratch_operands = 0 : i64, tpu.core_type = #tpu.core_type<tc>, window_params = [{transform_indices = @transform_0, window_bounds = array<i64: 32, 256>}, {pipeline_mode = #tpu.pipeline_mode<synchronous>, transform_indices = @transform_1, window_bounds = array<i64: 32, 32>}, {pipeline_mode = #tpu.pipeline_mode<synchronous>, transform_indices = @transform_2, window_bounds = array<i64: 32, 1>}, {pipeline_mode = #tpu.pipeline_mode<synchronous>, transform_indices = @transform_3, window_bounds = array<i64: 64, 32>}, {pipeline_mode = #tpu.pipeline_mode<synchronous>, transform_indices = @transform_4, window_bounds = array<i64: 64, 1>}, {pipeline_mode = #tpu.pipeline_mode<synchronous>, transform_indices = @transform_5, window_bounds = array<i64: 64, 64>}, {pipeline_mode = #tpu.pipeline_mode<synchronous>, transform_indices = @transform_6, window_bounds = array<i64: 64, 1>}, {pipeline_mode = #tpu.pipeline_mode<synchronous>, transform_indices = @transform_7, window_bounds = array<i64: 32, 64>}, {pipeline_mode = #tpu.pipeline_mode<synchronous>, transform_indices = @transform_8, window_bounds = array<i64: 32, 1>}, {pipeline_mode = #tpu.pipeline_mode<synchronous>, transform_indices = @transform_9, window_bounds = array<i64: 32, 1>}, {pipeline_mode = #tpu.pipeline_mode<synchronous>, transform_indices = @transform_10, window_bounds = array<i64: 1, 1>}, {transform_indices = @transform_11, window_bounds = array<i64: 1, 256>}]} {
    %c0 = arith.constant 0 : index
    %c0_0 = arith.constant 0 : index
    %0 = vector.load %arg1[%c0, %c0_0] : memref<32x256xbf16, #tpu.memory_space<vmem>>, vector<32x256xbf16>
    %c0_1 = arith.constant 0 : index
    %c0_2 = arith.constant 0 : index
    %1 = vector.load %arg2[%c0_1, %c0_2] : memref<32x32xbf16, #tpu.memory_space<vmem>>, vector<32x32xbf16>
    %cst = arith.constant dense<0.000000e+00> : vector<32x256xf32>
    %2 = tpu.matmul %1, %0, %cst {dimension_numbers = #tpu.dot_dimension_numbers<[1], [0], [0], [1], [0, 0, 1, 1], [], []>} : vector<32x32xbf16>, vector<32x256xbf16>, vector<32x256xf32> -> vector<32x256xf32>
    %c0_3 = arith.constant 0 : index
    %c0_4 = arith.constant 0 : index
    %3 = vector.load %arg3[%c0_3, %c0_4] : memref<32x1xf32, #tpu.memory_space<vmem>>, vector<32x1xf32>
    %4 = vector.broadcast %3 : vector<32x1xf32> to vector<32x256xf32>
    %5 = arith.addf %2, %4 : vector<32x256xf32>
    %cst_5 = arith.constant 0.000000e+00 : f32
    %6 = vector.broadcast %cst_5 : f32 to vector<32x256xf32>
    %7 = arith.maximumf %5, %6 : vector<32x256xf32>
    %8 = arith.truncf %7 : vector<32x256xf32> to vector<32x256xbf16>
    %c0_6 = arith.constant 0 : index
    %c0_7 = arith.constant 0 : index
    %9 = vector.load %arg4[%c0_6, %c0_7] : memref<64x32xbf16, #tpu.memory_space<vmem>>, vector<64x32xbf16>
    %cst_8 = arith.constant dense<0.000000e+00> : vector<64x256xf32>
    %10 = tpu.matmul %9, %8, %cst_8 {dimension_numbers = #tpu.dot_dimension_numbers<[1], [0], [0], [1], [0, 0, 1, 1], [], []>} : vector<64x32xbf16>, vector<32x256xbf16>, vector<64x256xf32> -> vector<64x256xf32>
    %c0_9 = arith.constant 0 : index
    %c0_10 = arith.constant 0 : index
    %11 = vector.load %arg5[%c0_9, %c0_10] : memref<64x1xf32, #tpu.memory_space<vmem>>, vector<64x1xf32>
    %12 = vector.broadcast %11 : vector<64x1xf32> to vector<64x256xf32>
    %13 = arith.addf %10, %12 : vector<64x256xf32>
    %cst_11 = arith.constant 0.000000e+00 : f32
    %14 = vector.broadcast %cst_11 : f32 to vector<64x256xf32>
    %15 = arith.maximumf %13, %14 : vector<64x256xf32>
    %16 = arith.truncf %15 : vector<64x256xf32> to vector<64x256xbf16>
    %c0_12 = arith.constant 0 : index
    %c0_13 = arith.constant 0 : index
    %17 = vector.load %arg6[%c0_12, %c0_13] : memref<64x64xbf16, #tpu.memory_space<vmem>>, vector<64x64xbf16>
    %cst_14 = arith.constant dense<0.000000e+00> : vector<64x256xf32>
    %18 = tpu.matmul %17, %16, %cst_14 {dimension_numbers = #tpu.dot_dimension_numbers<[1], [0], [0], [1], [0, 0, 1, 1], [], []>} : vector<64x64xbf16>, vector<64x256xbf16>, vector<64x256xf32> -> vector<64x256xf32>
    %c0_15 = arith.constant 0 : index
    %c0_16 = arith.constant 0 : index
    %19 = vector.load %arg7[%c0_15, %c0_16] : memref<64x1xf32, #tpu.memory_space<vmem>>, vector<64x1xf32>
    %20 = vector.broadcast %19 : vector<64x1xf32> to vector<64x256xf32>
    %21 = arith.addf %18, %20 : vector<64x256xf32>
    %cst_17 = arith.constant 0.000000e+00 : f32
    %22 = vector.broadcast %cst_17 : f32 to vector<64x256xf32>
    %23 = arith.maximumf %21, %22 : vector<64x256xf32>
    %24 = arith.truncf %23 : vector<64x256xf32> to vector<64x256xbf16>
    %c0_18 = arith.constant 0 : index
    %c0_19 = arith.constant 0 : index
    %25 = vector.load %arg8[%c0_18, %c0_19] : memref<32x64xbf16, #tpu.memory_space<vmem>>, vector<32x64xbf16>
    %cst_20 = arith.constant dense<0.000000e+00> : vector<32x256xf32>
    %26 = tpu.matmul %25, %24, %cst_20 {dimension_numbers = #tpu.dot_dimension_numbers<[1], [0], [0], [1], [0, 0, 1, 1], [], []>} : vector<32x64xbf16>, vector<64x256xbf16>, vector<32x256xf32> -> vector<32x256xf32>
    %c0_21 = arith.constant 0 : index
    %c0_22 = arith.constant 0 : index
    %27 = vector.load %arg9[%c0_21, %c0_22] : memref<32x1xf32, #tpu.memory_space<vmem>>, vector<32x1xf32>
    %28 = vector.broadcast %27 : vector<32x1xf32> to vector<32x256xf32>
    %29 = arith.addf %26, %28 : vector<32x256xf32>
    %cst_23 = arith.constant 0.000000e+00 : f32
    %30 = vector.broadcast %cst_23 : f32 to vector<32x256xf32>
    %31 = arith.maximumf %29, %30 : vector<32x256xf32>
    %32 = arith.truncf %31 : vector<32x256xf32> to vector<32x256xbf16>
    %33 = arith.extf %32 : vector<32x256xbf16> to vector<32x256xf32>
    %c0_24 = arith.constant 0 : index
    %c0_25 = arith.constant 0 : index
    %34 = vector.load %arg10[%c0_24, %c0_25] : memref<32x1xf32, #tpu.memory_space<vmem>>, vector<32x1xf32>
    %35 = vector.broadcast %34 : vector<32x1xf32> to vector<32x256xf32>
    %36 = arith.mulf %33, %35 : vector<32x256xf32>
    %cst_26 = arith.constant dense<0.000000e+00> : vector<256xf32>
    %37 = vector.multi_reduction <add>, %36, %cst_26 [0] : vector<32x256xf32> to vector<256xf32>
    %38 = vector.shape_cast %37 : vector<256xf32> to vector<1x256xf32>
    %c0_27 = arith.constant 0 : index
    %c0_28 = arith.constant 0 : index
    %39 = vector.load %arg11[%c0_27, %c0_28] : memref<1x1xf32, #tpu.memory_space<vmem>>, vector<1x1xf32>
    %40 = vector.broadcast %39 : vector<1x1xf32> to vector<1x256xf32>
    %41 = arith.addf %38, %40 : vector<1x256xf32>
    %c0_29 = arith.constant 0 : index
    %c0_30 = arith.constant 0 : index
    %42 = vector.load %arg12[%c0_29, %c0_30] : memref<1x256xf32, #tpu.memory_space<vmem>>, vector<1x256xf32>
    tpu.vector_store %arg12[%c0_29, %c0_30], %41 {strides = array<i32>} : memref<1x256xf32, #tpu.memory_space<vmem>>, vector<1x256xf32>,
    return
  }
  func.func @transform_0(%arg0: i32) -> (i32, i32) {
    %c0_i32 = arith.constant 0 : i32
    %c0_i32_0 = arith.constant 0 : i32
    return %c0_i32, %arg0 : i32, i32
  }
  func.func @transform_1(%arg0: i32) -> (i32, i32) {
    %c0_i32 = arith.constant 0 : i32
    %c0_i32_0 = arith.constant 0 : i32
    %c0_i32_1 = arith.constant 0 : i32
    return %c0_i32, %c0_i32_0 : i32, i32
  }
  func.func @transform_2(%arg0: i32) -> (i32, i32) {
    %c0_i32 = arith.constant 0 : i32
    %c0_i32_0 = arith.constant 0 : i32
    %c0_i32_1 = arith.constant 0 : i32
    return %c0_i32, %c0_i32_0 : i32, i32
  }
  func.func @transform_3(%arg0: i32) -> (i32, i32) {
    %c0_i32 = arith.constant 0 : i32
    %c0_i32_0 = arith.constant 0 : i32
    %c0_i32_1 = arith.constant 0 : i32
    return %c0_i32, %c0_i32_0 : i32, i32
  }
  func.func @transform_4(%arg0: i32) -> (i32, i32) {
    %c0_i32 = arith.constant 0 : i32
    %c0_i32_0 = arith.constant 0 : i32
    %c0_i32_1 = arith.constant 0 : i32
    return %c0_i32, %c0_i32_0 : i32, i32
  }
  func.func @transform_5(%arg0: i32) -> (i32, i32) {
    %c0_i32 = arith.constant 0 : i32
    %c0_i32_0 = arith.constant 0 : i32
    %c0_i32_1 = arith.constant 0 : i32
    return %c0_i32, %c0_i32_0 : i32, i32
  }
  func.func @transform_6(%arg0: i32) -> (i32, i32) {
    %c0_i32 = arith.constant 0 : i32
    %c0_i32_0 = arith.constant 0 : i32
    %c0_i32_1 = arith.constant 0 : i32
    return %c0_i32, %c0_i32_0 : i32, i32
  }
  func.func @transform_7(%arg0: i32) -> (i32, i32) {
    %c0_i32 = arith.constant 0 : i32
    %c0_i32_0 = arith.constant 0 : i32
    %c0_i32_1 = arith.constant 0 : i32
    return %c0_i32, %c0_i32_0 : i32, i32
  }
  func.func @transform_8(%arg0: i32) -> (i32, i32) {
    %c0_i32 = arith.constant 0 : i32
    %c0_i32_0 = arith.constant 0 : i32
    %c0_i32_1 = arith.constant 0 : i32
    return %c0_i32, %c0_i32_0 : i32, i32
  }
  func.func @transform_9(%arg0: i32) -> (i32, i32) {
    %c0_i32 = arith.constant 0 : i32
    %c0_i32_0 = arith.constant 0 : i32
    %c0_i32_1 = arith.constant 0 : i32
    return %c0_i32, %c0_i32_0 : i32, i32
  }
  func.func @transform_10(%arg0: i32) -> (i32, i32) {
    %c0_i32 = arith.constant 0 : i32
    %c0_i32_0 = arith.constant 0 : i32
    %c0_i32_1 = arith.constant 0 : i32
    return %c0_i32, %c0_i32_0 : i32, i32
  }
  func.func @transform_11(%arg0: i32) -> (i32, i32) {
    %c0_i32 = arith.constant 0 : i32
    %c0_i32_0 = arith.constant 0 : i32
    return %c0_i32, %arg0 : i32, i32
  }
}

</mosaic_0001>

<llo_original>
// kernel: tpu_custom_call.1
$region0: #{tpu_custom_call.1}
  #allocation0 [shape = 'u32[]', space=smem, size = 0x4, offset = 0x4, fixed_abs, tag = 'smem constant byte address 0x4 - core index']
  #allocation1 [shape = 'u32[144,128]{1,0:T(1,128)}', space=vmem, size = 0x12000, scoped, tag = 'internal scratch']
  #allocation2 [shape = 'f32[1,1]{1,0:T(1,128)S(1)}', space=vmem, size = 0x200, scoped, tag = 'scoped memory for tpu_custom_call.1']
  %s0 = inlined_call_operand.vmem [shape: bf16[32,512], index: 0, kind: input, shape index: {}]
  %s1 = inlined_call_operand.vmem [shape: bf16[32,32], index: 1, kind: input, shape index: {}]
  %s2 = inlined_call_operand.vmem [shape: f32[32,1], index: 2, kind: input, shape index: {}]
  %s3 = inlined_call_operand.vmem [shape: bf16[64,32], index: 3, kind: input, shape index: {}]
  %s4 = inlined_call_operand.vmem [shape: f32[64,1], index: 4, kind: input, shape index: {}]
  %s5 = inlined_call_operand.vmem [shape: bf16[64,64], index: 5, kind: input, shape index: {}]
  %s6 = inlined_call_operand.vmem [shape: f32[64,1], index: 6, kind: input, shape index: {}]
  %s7 = inlined_call_operand.vmem [shape: bf16[32,64], index: 7, kind: input, shape index: {}]
  %s8 = inlined_call_operand.vmem [shape: f32[32,1], index: 8, kind: input, shape index: {}]
  %s9 = inlined_call_operand.vmem [shape: f32[32,1], index: 9, kind: input, shape index: {}]
  %s10 = inlined_call_operand.<no memory space> [shape: f32[1,1], index: 10, kind: input, shape index: {}]
  %s11 = inlined_call_operand.hbm [shape: f32[1,512], index: 11, kind: output, shape index: {}]
  %s12 = sld [smem:[#allocation0]]
  $region115: #{tpu_custom_call.1} parent=0
    _
  %s14 = ssub.s32 1, %s12
  %s15 = scalar_select 0, %s14, %s12
  %v16 = vstv %s10
  %17 = vst [vmem:[#allocation2] sm:$0x1] %v16
  $region1: #{tpu_custom_call.1} parent=0
    #allocation3 [shape = 'u8[32768]{0}', space=vmem, size = 0x8000, scoped, tag = 'input window, operand 0']
    #allocation4 [shape = 'u8[2048]{0}', space=vmem, size = 0x800, scoped, tag = 'output window, operand 0']
    #allocation5 [shape = 's32[2]{0}', space=sflag, size = 0x8, scoped, tag = 'scoped memory for tpu_custom_call.1']
    %18 = vsyncpa [#allocation5], 0
    %s19 = scalar_lea.sflag [#allocation5], 1
    %20 = vsyncpa %s19, 0
    loop: start=0, step=1, limit=4
    $region2: #{tpu_custom_call.1} parent=1 // loop_pre_header
      _
    $region3: #{tpu_custom_call.1} parent=1 // loop_header
      %s22 = sphi 0, %s26
      %p23 = scmp.ge.s32.totalorder %s22, 4
      %s32 = sphi 0, %s34
      %s35 = sphi 0, %s32
      %s36 = sphi 0, %s35
      %s52 = sphi 0, %s36
      %s56 = sphi 0, %s56
      %s58 = sphi 0, %s56
      %s59 = sphi 0, %s58
      %s73 = sphi 0, %s59
      %s77 = sphi 0, %s77
      %s79 = sphi 0, %s77
      %s80 = sphi 0, %s79
      %s94 = sphi 0, %s80
      %s98 = sphi 0, %s98
      %s100 = sphi 0, %s98
      %s101 = sphi 0, %s100
      %s115 = sphi 0, %s101
      %s119 = sphi 0, %s119
      %s121 = sphi 0, %s119
      %s122 = sphi 0, %s121
      %s136 = sphi 0, %s122
      %s140 = sphi 0, %s140
      %s142 = sphi 0, %s140
      %s143 = sphi 0, %s142
      %s157 = sphi 0, %s143
      %s161 = sphi 0, %s161
      %s163 = sphi 0, %s161
      %s164 = sphi 0, %s163
      %s178 = sphi 0, %s164
      %s182 = sphi 0, %s182
      %s184 = sphi 0, %s182
      %s185 = sphi 0, %s184
      %s199 = sphi 0, %s185
      %s203 = sphi 0, %s203
      %s205 = sphi 0, %s203
      %s206 = sphi 0, %s205
      %s220 = sphi 0, %s206
      %s224 = sphi 0, %s224
      %s226 = sphi 0, %s224
      %s227 = sphi 0, %s226
      %s241 = sphi 0, %s227
      %s245 = sphi 0, %s245
      %s247 = sphi 0, %s245
      %s248 = sphi 0, %s247
      %s262 = sphi 0, %s248
      %s268 = sphi 0, %s270
      %s271 = sphi 0, %s268
      %s272 = sphi 0, %s271
      %s288 = sphi 0, %s272
    $region4: #{tpu_custom_call.1} parent=1 // loop_header_branch
      %25 = sbr.rel (%p23) target = $region8
    $region5: #{tpu_custom_call.1} parent=1 // loop_body
      %s27 = ssub.s32 %s22, 1
      %s28 = ssub.s32 %s22, 2
      %s29 = sadd.s32 %s22, 1
      %s30 = ssub.s32 %s22, %s29
      %p31 = scmp.eq.s32.totalorder %s30, 0
      %s33 = sadd.s32 %s32, 1
      %s34 = scalar_select %p31, %s32, %s33
      %p37 = pneg %p31
      %p38 = scmp.eq.s32.totalorder %s22, 1
      %p39 = por %p37, %p38
      %p40 = scmp.ne.s32.totalorder %s32, %s35
      %p41 = scmp.eq.s32.totalorder %s22, 0
      %p42 = por %p40, %p41
      %p43 = scmp.ne.s32.totalorder %s32, %s35
      %p44 = scmp.eq.s32.totalorder %s27, 1
      %p45 = por %p43, %p44
      %p46 = scmp.ne.s32.totalorder %s35, %s36
      %p47 = scmp.eq.s32.totalorder %s27, 0
      %p48 = por %p46, %p47
      %p49 = scmp.ne.s32.totalorder %s35, %s36
      %p50 = scmp.eq.s32.totalorder %s28, 1
      %p51 = por %p49, %p50
      %p53 = scmp.ne.s32.totalorder %s36, %s52
      %p54 = scmp.eq.s32.totalorder %s28, 0
      %p55 = por %p53, %p54
      %s57 = sadd.s32 %s56, 1
      %p60 = scmp.eq.s32.totalorder %s22, 1
      %p61 = scmp.ne.s32.totalorder %s56, %s58
      %p62 = scmp.eq.s32.totalorder %s22, 0
      %p63 = por %p61, %p62
      %p64 = scmp.ne.s32.totalorder %s56, %s58
      %p65 = scmp.eq.s32.totalorder %s27, 1
      %p66 = por %p64, %p65
      %p67 = scmp.ne.s32.totalorder %s58, %s59
      %p68 = scmp.eq.s32.totalorder %s27, 0
      %p69 = por %p67, %p68
      %p70 = scmp.ne.s32.totalorder %s58, %s59
      %p71 = scmp.eq.s32.totalorder %s28, 1
      %p72 = por %p70, %p71
      %p74 = scmp.ne.s32.totalorder %s59, %s73
      %p75 = scmp.eq.s32.totalorder %s28, 0
      %p76 = por %p74, %p75
      %s78 = sadd.s32 %s77, 1
      %p81 = scmp.eq.s32.totalorder %s22, 1
      %p82 = scmp.ne.s32.totalorder %s77, %s79
      %p83 = scmp.eq.s32.totalorder %s22, 0
      %p84 = por %p82, %p83
      %p85 = scmp.ne.s32.totalorder %s77, %s79
      %p86 = scmp.eq.s32.totalorder %s27, 1
      %p87 = por %p85, %p86
      %p88 = scmp.ne.s32.totalorder %s79, %s80
      %p89 = scmp.eq.s32.totalorder %s27, 0
      %p90 = por %p88, %p89
      %p91 = scmp.ne.s32.totalorder %s79, %s80
      %p92 = scmp.eq.s32.totalorder %s28, 1
      %p93 = por %p91, %p92
      %p95 = scmp.ne.s32.totalorder %s80, %s94
      %p96 = scmp.eq.s32.totalorder %s28, 0
      %p97 = por %p95, %p96
      %s99 = sadd.s32 %s98, 1
      %p102 = scmp.eq.s32.totalorder %s22, 1
      %p103 = scmp.ne.s32.totalorder %s98, %s100
      %p104 = scmp.eq.s32.totalorder %s22, 0
      %p105 = por %p103, %p104
      %p106 = scmp.ne.s32.totalorder %s98, %s100
      %p107 = scmp.eq.s32.totalorder %s27, 1
      %p108 = por %p106, %p107
      %p109 = scmp.ne.s32.totalorder %s100, %s101
      %p110 = scmp.eq.s32.totalorder %s27, 0
      %p111 = por %p109, %p110
      %p112 = scmp.ne.s32.totalorder %s100, %s101
      %p113 = scmp.eq.s32.totalorder %s28, 1
      %p114 = por %p112, %p113
      %p116 = scmp.ne.s32.totalorder %s101, %s115
      %p117 = scmp.eq.s32.totalorder %s28, 0
      %p118 = por %p116, %p117
      %s120 = sadd.s32 %s119, 1
      %p123 = scmp.eq.s32.totalorder %s22, 1
      %p124 = scmp.ne.s32.totalorder %s119, %s121
      %p125 = scmp.eq.s32.totalorder %s22, 0
      %p126 = por %p124, %p125
      %p127 = scmp.ne.s32.totalorder %s119, %s121
      %p128 = scmp.eq.s32.totalorder %s27, 1
      %p129 = por %p127, %p128
      %p130 = scmp.ne.s32.totalorder %s121, %s122
      %p131 = scmp.eq.s32.totalorder %s27, 0
      %p132 = por %p130, %p131
      %p133 = scmp.ne.s32.totalorder %s121, %s122
      %p134 = scmp.eq.s32.totalorder %s28, 1
      %p135 = por %p133, %p134
      %p137 = scmp.ne.s32.totalorder %s122, %s136
      %p138 = scmp.eq.s32.totalorder %s28, 0
      %p139 = por %p137, %p138
      %s141 = sadd.s32 %s140, 1
      %p144 = scmp.eq.s32.totalorder %s22, 1
      %p145 = scmp.ne.s32.totalorder %s140, %s142
      %p146 = scmp.eq.s32.totalorder %s22, 0
      %p147 = por %p145, %p146
      %p148 = scmp.ne.s32.totalorder %s140, %s142
      %p149 = scmp.eq.s32.totalorder %s27, 1
      %p150 = por %p148, %p149
      %p151 = scmp.ne.s32.totalorder %s142, %s143
      %p152 = scmp.eq.s32.totalorder %s27, 0
      %p153 = por %p151, %p152
      %p154 = scmp.ne.s32.totalorder %s142, %s143
      %p155 = scmp.eq.s32.totalorder %s28, 1
      %p156 = por %p154, %p155
      %p158 = scmp.ne.s32.totalorder %s143, %s157
      %p159 = scmp.eq.s32.totalorder %s28, 0
      %p160 = por %p158, %p159
      %s162 = sadd.s32 %s161, 1
      %p165 = scmp.eq.s32.totalorder %s22, 1
      %p166 = scmp.ne.s32.totalorder %s161, %s163
      %p167 = scmp.eq.s32.totalorder %s22, 0
      %p168 = por %p166, %p167
      %p169 = scmp.ne.s32.totalorder %s161, %s163
      %p170 = scmp.eq.s32.totalorder %s27, 1
      %p171 = por %p169, %p170
      %p172 = scmp.ne.s32.totalorder %s163, %s164
      %p173 = scmp.eq.s32.totalorder %s27, 0
      %p174 = por %p172, %p173
      %p175 = scmp.ne.s32.totalorder %s163, %s164
      %p176 = scmp.eq.s32.totalorder %s28, 1
      %p177 = por %p175, %p176
      %p179 = scmp.ne.s32.totalorder %s164, %s178
      %p180 = scmp.eq.s32.totalorder %s28, 0
      %p181 = por %p179, %p180
      %s183 = sadd.s32 %s182, 1
      %p186 = scmp.eq.s32.totalorder %s22, 1
      %p187 = scmp.ne.s32.totalorder %s182, %s184
      %p188 = scmp.eq.s32.totalorder %s22, 0
      %p189 = por %p187, %p188
      %p190 = scmp.ne.s32.totalorder %s182, %s184
      %p191 = scmp.eq.s32.totalorder %s27, 1
      %p192 = por %p190, %p191
      %p193 = scmp.ne.s32.totalorder %s184, %s185
      %p194 = scmp.eq.s32.totalorder %s27, 0
      %p195 = por %p193, %p194
      %p196 = scmp.ne.s32.totalorder %s184, %s185
      %p197 = scmp.eq.s32.totalorder %s28, 1
      %p198 = por %p196, %p197
      %p200 = scmp.ne.s32.totalorder %s185, %s199
      %p201 = scmp.eq.s32.totalorder %s28, 0
      %p202 = por %p200, %p201
      %s204 = sadd.s32 %s203, 1
      %p207 = scmp.eq.s32.totalorder %s22, 1
      %p208 = scmp.ne.s32.totalorder %s203, %s205
      %p209 = scmp.eq.s32.totalorder %s22, 0
      %p210 = por %p208, %p209
      %p211 = scmp.ne.s32.totalorder %s203, %s205
      %p212 = scmp.eq.s32.totalorder %s27, 1
      %p213 = por %p211, %p212
      %p214 = scmp.ne.s32.totalorder %s205, %s206
      %p215 = scmp.eq.s32.totalorder %s27, 0
      %p216 = por %p214, %p215
      %p217 = scmp.ne.s32.totalorder %s205, %s206
      %p218 = scmp.eq.s32.totalorder %s28, 1
      %p219 = por %p217, %p218
      %p221 = scmp.ne.s32.totalorder %s206, %s220
      %p222 = scmp.eq.s32.totalorder %s28, 0
      %p223 = por %p221, %p222
      %s225 = sadd.s32 %s224, 1
      %p228 = scmp.eq.s32.totalorder %s22, 1
      %p229 = scmp.ne.s32.totalorder %s224, %s226
      %p230 = scmp.eq.s32.totalorder %s22, 0
      %p231 = por %p229, %p230
      %p232 = scmp.ne.s32.totalorder %s224, %s226
      %p233 = scmp.eq.s32.totalorder %s27, 1
      %p234 = por %p232, %p233
      %p235 = scmp.ne.s32.totalorder %s226, %s227
      %p236 = scmp.eq.s32.totalorder %s27, 0
      %p237 = por %p235, %p236
      %p238 = scmp.ne.s32.totalorder %s226, %s227
      %p239 = scmp.eq.s32.totalorder %s28, 1
      %p240 = por %p238, %p239
      %p242 = scmp.ne.s32.totalorder %s227, %s241
      %p243 = scmp.eq.s32.totalorder %s28, 0
      %p244 = por %p242, %p243
      %s246 = sadd.s32 %s245, 1
      %p249 = scmp.eq.s32.totalorder %s22, 1
      %p250 = scmp.ne.s32.totalorder %s245, %s247
      %p251 = scmp.eq.s32.totalorder %s22, 0
      %p252 = por %p250, %p251
      %p253 = scmp.ne.s32.totalorder %s245, %s247
      %p254 = scmp.eq.s32.totalorder %s27, 1
      %p255 = por %p253, %p254
      %p256 = scmp.ne.s32.totalorder %s247, %s248
      %p257 = scmp.eq.s32.totalorder %s27, 0
      %p258 = por %p256, %p257
      %p259 = scmp.ne.s32.totalorder %s247, %s248
      %p260 = scmp.eq.s32.totalorder %s28, 1
      %p261 = por %p259, %p260
      %p263 = scmp.ne.s32.totalorder %s248, %s262
      %p264 = scmp.eq.s32.totalorder %s28, 0
      %p265 = por %p263, %p264
      %s266 = ssub.s32 %s22, %s29
      %p267 = scmp.eq.s32.totalorder %s266, 0
      %s269 = sadd.s32 %s268, 1
      %s270 = scalar_select %p267, %s268, %s269
      %p273 = pneg %p267
      %p274 = scmp.eq.s32.totalorder %s22, 1
      %p275 = por %p273, %p274
      %p276 = scmp.ne.s32.totalorder %s268, %s271
      %p277 = scmp.eq.s32.totalorder %s22, 0
      %p278 = por %p276, %p277
      %p279 = scmp.ne.s32.totalorder %s268, %s271
      %p280 = scmp.eq.s32.totalorder %s27, 1
      %p281 = por %p279, %p280
      %p282 = scmp.ne.s32.totalorder %s271, %s272
      %p283 = scmp.eq.s32.totalorder %s27, 0
      %p284 = por %p282, %p283
      %p285 = scmp.ne.s32.totalorder %s271, %s272
      %p286 = scmp.eq.s32.totalorder %s28, 1
      %p287 = por %p285, %p286
      %p289 = scmp.ne.s32.totalorder %s272, %s288
      %p290 = scmp.eq.s32.totalorder %s28, 0
      %p291 = por %p289, %p290
      %p292 = scmp.le.s32.totalorder 1, %s22
      %p293 = scmp.lt.s32.totalorder %s22, 3
      %p294 = pnand %p292, %p293
      %p295 = pneg %p294
      // Predicated region
      $region9: #{tpu_custom_call.1} parent=5 // pred_check
        _
      $region10: #{tpu_custom_call.1} parent=5 // pred_check_branch
        %297 = sbr.rel (%p294) target = $region12
      $region11: #{tpu_custom_call.1} parent=5 // pred_region
        %s298 = ssub.s32 %s22, 1
        // Predicated region
        $region13: #{tpu_custom_call.1} parent=11 // pred_check
          %p299 = pneg %p69
        $region14: #{tpu_custom_call.1} parent=11 // pred_check_branch
          %301 = sbr.rel (%p299) target = $region16
        $region15: #{tpu_custom_call.1} parent=11 // pred_region
          _
        $region16: #{tpu_custom_call.1} parent=11 // pred_fallthru
          _
        // Predicated region
        $region17: #{tpu_custom_call.1} parent=11 // pred_check
          %p302 = pneg %p90
        $region18: #{tpu_custom_call.1} parent=11 // pred_check_branch
          %304 = sbr.rel (%p302) target = $region20
        $region19: #{tpu_custom_call.1} parent=11 // pred_region
          _
        $region20: #{tpu_custom_call.1} parent=11 // pred_fallthru
          _
        // Predicated region
        $region21: #{tpu_custom_call.1} parent=11 // pred_check
          %p305 = pneg %p111
        $region22: #{tpu_custom_call.1} parent=11 // pred_check_branch
          %307 = sbr.rel (%p305) target = $region24
        $region23: #{tpu_custom_call.1} parent=11 // pred_region
          _
        $region24: #{tpu_custom_call.1} parent=11 // pred_fallthru
          _
        // Predicated region
        $region25: #{tpu_custom_call.1} parent=11 // pred_check
          %p308 = pneg %p132
        $region26: #{tpu_custom_call.1} parent=11 // pred_check_branch
          %310 = sbr.rel (%p308) target = $region28
        $region27: #{tpu_custom_call.1} parent=11 // pred_region
          _
        $region28: #{tpu_custom_call.1} parent=11 // pred_fallthru
          _
        // Predicated region
        $region29: #{tpu_custom_call.1} parent=11 // pred_check
          %p311 = pneg %p153
        $region30: #{tpu_custom_call.1} parent=11 // pred_check_branch
          %313 = sbr.rel (%p311) target = $region32
        $region31: #{tpu_custom_call.1} parent=11 // pred_region
          _
        $region32: #{tpu_custom_call.1} parent=11 // pred_fallthru
          _
        // Predicated region
        $region33: #{tpu_custom_call.1} parent=11 // pred_check
          %p314 = pneg %p174
        $region34: #{tpu_custom_call.1} parent=11 // pred_check_branch
          %316 = sbr.rel (%p314) target = $region36
        $region35: #{tpu_custom_call.1} parent=11 // pred_region
          _
        $region36: #{tpu_custom_call.1} parent=11 // pred_fallthru
          _
        // Predicated region
        $region37: #{tpu_custom_call.1} parent=11 // pred_check
          %p317 = pneg %p195
        $region38: #{tpu_custom_call.1} parent=11 // pred_check_branch
          %319 = sbr.rel (%p317) target = $region40
        $region39: #{tpu_custom_call.1} parent=11 // pred_region
          _
        $region40: #{tpu_custom_call.1} parent=11 // pred_fallthru
          _
        // Predicated region
        $region41: #{tpu_custom_call.1} parent=11 // pred_check
          %p320 = pneg %p216
        $region42: #{tpu_custom_call.1} parent=11 // pred_check_branch
          %322 = sbr.rel (%p320) target = $region44
        $region43: #{tpu_custom_call.1} parent=11 // pred_region
          _
        $region44: #{tpu_custom_call.1} parent=11 // pred_fallthru
          _
        // Predicated region
        $region45: #{tpu_custom_call.1} parent=11 // pred_check
          %p323 = pneg %p237
        $region46: #{tpu_custom_call.1} parent=11 // pred_check_branch
          %325 = sbr.rel (%p323) target = $region48
        $region47: #{tpu_custom_call.1} parent=11 // pred_region
          _
        $region48: #{tpu_custom_call.1} parent=11 // pred_fallthru
          _
        // Predicated region
        $region49: #{tpu_custom_call.1} parent=11 // pred_check
          %p326 = pneg %p258
        $region50: #{tpu_custom_call.1} parent=11 // pred_check_branch
          %328 = sbr.rel (%p326) target = $region52
        $region51: #{tpu_custom_call.1} parent=11 // pred_region
          _
        $region52: #{tpu_custom_call.1} parent=11 // pred_fallthru
          _
      $region12: #{tpu_custom_call.1} parent=5 // pred_fallthru
        _
      %p329 = scmp.lt.s32.totalorder %s22, 2
      // Predicated region
      $region53: #{tpu_custom_call.1} parent=5 // pred_check
        %p330 = pneg %p329
      $region54: #{tpu_custom_call.1} parent=5 // pred_check_branch
        %332 = sbr.rel (%p330) target = $region56
      $region55: #{tpu_custom_call.1} parent=5 // pred_region
        // Predicated region
        $region57: #{tpu_custom_call.1} parent=55 // pred_check
          %p333 = pneg %p42
        $region58: #{tpu_custom_call.1} parent=55 // pred_check_branch
          %335 = sbr.rel (%p333) target = $region60
        $region59: #{tpu_custom_call.1} parent=55 // pred_region
          %s336 = sand.u32 %s32, 1
          %s337 = sand.u32 %s32, 1
          %s338 = smul.addr %s337, 32
          %s339 = scalar_lea.vmem [#allocation3], %s338
          %s340 = smul.u32 2, %s22
          %s341 = smul.addr %s340, 4
          %s342 = scalar_lea.vmem %s0, %s341
          // Predicated region
          $region61: #{tpu_custom_call.1} parent=59 // pred_check
            _
          $region62: #{tpu_custom_call.1} parent=59 // pred_check_branch
            %344 = sbr.rel (0) target = $region64
          $region63: #{tpu_custom_call.1} parent=59 // pred_region
            // Predicated region
            $region65: #{tpu_custom_call.1} parent=63 // pred_check
              _
            $region66: #{tpu_custom_call.1} parent=63 // pred_check_branch
              %346 = sbr.rel (0) target = $region68
            $region67: #{tpu_custom_call.1} parent=63 // pred_region
              // Predicated region
              $region80: #{tpu_custom_call.1} parent=67 // pred_check
                _
              $region81: #{tpu_custom_call.1} parent=67 // pred_check_branch
                %367 = sbr.rel (0) target = $region83
              $region82: #{tpu_custom_call.1} parent=67 // pred_region
                loop: start=0, step=1, limit=1
                $region84: #{tpu_custom_call.1} parent=82 // loop_pre_header
                  _
                $region85: #{tpu_custom_call.1} parent=82 // loop_header
                  %s369 = sphi 0, %s373
                  %p370 = scmp.ge.s32.totalorder %s369, 1
                  %s374 = sphi %s342, %s342
                  %s375 = sphi %s339, %s339
                $region86: #{tpu_custom_call.1} parent=82 // loop_header_branch
                  %372 = sbr.rel (%p370) target = $region90
                $region87: #{tpu_custom_call.1} parent=82 // loop_body
                  %v376 = vld [vmem:[%s374] sm:$0xff]
                  %377 = vst [vmem:[%s375] sm:$0xff] %v376
                  %v378 = vld [vmem:[%s374 + $0x10] sm:$0xff]
                  %379 = vst [vmem:[%s375 + $0x8] sm:$0xff] %v378
                  %v380 = vld [vmem:[%s374 + $0x20] sm:$0xff]
                  %381 = vst [vmem:[%s375 + $0x10] sm:$0xff] %v380
                  %v382 = vld [vmem:[%s374 + $0x30] sm:$0xff]
                  %383 = vst [vmem:[%s375 + $0x18] sm:$0xff] %v382
                $region88: #{tpu_custom_call.1} parent=82 // loop_footer
                  %s373 = sadd.s32 1, %s369
                $region89: #{tpu_custom_call.1} parent=82 // loop_footer_branch
                  %368 = sbr.rel target = $region85
                $region90: #{tpu_custom_call.1} parent=82 // loop_exit
                  _
              $region83: #{tpu_custom_call.1} parent=67 // pred_fallthru
                _
              // Predicated region
              $region91: #{tpu_custom_call.1} parent=67 // pred_check
                _
              $region92: #{tpu_custom_call.1} parent=67 // pred_check_branch
                %385 = sbr.rel target = $region94
              $region93: #{tpu_custom_call.1} parent=67 // pred_region
                _
              $region94: #{tpu_custom_call.1} parent=67 // pred_fallthru
                _
            $region68: #{tpu_custom_call.1} parent=63 // pred_fallthru
              _
            // Predicated region
            $region69: #{tpu_custom_call.1} parent=63 // pred_check
              _
            $region70: #{tpu_custom_call.1} parent=63 // pred_check_branch
              %348 = sbr.rel target = $region72
            $region71: #{tpu_custom_call.1} parent=63 // pred_region
              loop: start=0, step=1, limit=1
              $region73: #{tpu_custom_call.1} parent=71 // loop_pre_header
                _
              $region74: #{tpu_custom_call.1} parent=71 // loop_header
                %s351 = sphi 0, %s355
                %p352 = scmp.ge.s32.totalorder %s351, 1
                %s356 = sphi %s342, %s342
                %s357 = sphi %s339, %s339
              $region75: #{tpu_custom_call.1} parent=71 // loop_header_branch
                %354 = sbr.rel (%p352) target = $region79
              $region76: #{tpu_custom_call.1} parent=71 // loop_body
                %v358 = vld [vmem:[%s356] sm:$0xff]
                %359 = vst [vmem:[%s357] sm:$0xff] %v358
                %v360 = vld [vmem:[%s356 + $0x10] sm:$0xff]
                %361 = vst [vmem:[%s357 + $0x8] sm:$0xff] %v360
                %v362 = vld [vmem:[%s356 + $0x20] sm:$0xff]
                %363 = vst [vmem:[%s357 + $0x10] sm:$0xff] %v362
                %v364 = vld [vmem:[%s356 + $0x30] sm:$0xff]
                %365 = vst [vmem:[%s357 + $0x18] sm:$0xff] %v364
              $region77: #{tpu_custom_call.1} parent=71 // loop_footer
                %s355 = sadd.s32 1, %s351
              $region78: #{tpu_custom_call.1} parent=71 // loop_footer_branch
                %350 = sbr.rel target = $region74
              $region79: #{tpu_custom_call.1} parent=71 // loop_exit
                _
            $region72: #{tpu_custom_call.1} parent=63 // pred_fallthru
              _
          $region64: #{tpu_custom_call.1} parent=59 // pred_fallthru
            _
          %386 = vnop
        $region60: #{tpu_custom_call.1} parent=55 // pred_fallthru
          _
      $region56: #{tpu_custom_call.1} parent=5 // pred_fallthru
        _
      %p387 = scmp.le.s32.totalorder 1, %s22
      %p388 = scmp.lt.s32.totalorder %s22, 3
      %p389 = pnand %p387, %p388
      %p390 = pneg %p389
      // Predicated region
      $region95: #{tpu_custom_call.1} parent=5 // pred_check
        _
      $region96: #{tpu_custom_call.1} parent=5 // pred_check_branch
        %392 = sbr.rel (%p389) target = $region98
      $region97: #{tpu_custom_call.1} parent=5 // pred_region
        %s393 = ssub.s32 %s22, 1
        %s394 = sand.u32 %s35, 1
        %s395 = sand.u32 %s35, 1
        %s396 = smul.addr %s395, 32
        %s397 = scalar_lea.vmem [#allocation3], %s396
        // Predicated region
        $region99: #{tpu_custom_call.1} parent=97 // pred_check
          %p398 = pneg %p48
        $region100: #{tpu_custom_call.1} parent=97 // pred_check_branch
          %400 = sbr.rel (%p398) target = $region102
        $region101: #{tpu_custom_call.1} parent=97 // pred_region
          _
        $region102: #{tpu_custom_call.1} parent=97 // pred_fallthru
          _
        %s401 = sand.u32 %s35, 1
        %s402 = sand.u32 %s35, 1
        %s403 = smul.addr %s402, 32
        %s404 = scalar_lea.vmem [#allocation3], %s403
        %p405 = pneg %p48
        %p406 = pneg %p45
        %p407 = pneg %p69
        %p408 = pneg %p66
        %p409 = pneg %p90
        %p410 = pneg %p87
        %p411 = pneg %p111
        %p412 = pneg %p108
        %p413 = pneg %p132
        %p414 = pneg %p129
        %p415 = pneg %p153
        %p416 = pneg %p150
        %p417 = pneg %p174
        %p418 = pneg %p171
        %p419 = pneg %p195
        %p420 = pneg %p192
        %p421 = pneg %p216
        %p422 = pneg %p213
        %p423 = pneg %p237
        %p424 = pneg %p234
        %p425 = pneg %p258
        %p426 = pneg %p255
        %p427 = pneg %p284
        %p428 = pneg %p281
        %s429 = sand.u32 %s271, 1
        %s430 = scalar_lea.sflag [#allocation5], %s429
        %s431 = sand.u32 %s271, 1
        %s432 = smul.addr %s431, 2
        %s433 = scalar_lea.vmem [#allocation4], %s432
        %s434 = smul.u32 2, %s27
        %s435 = smul.u32 2, %s27
        %v437 = vld [vmem:[%s397] sm:$0xff]
        %v438 = vld [vmem:[%s397 + $0x8] sm:$0xff]
        %v439 = vld [vmem:[%s397 + $0x10] sm:$0xff]
        %v440 = vld [vmem:[%s397 + $0x18] sm:$0xff]
        %v441 = vld [vmem:[%s1] sm:$0xf]
        %v442 = vld [vmem:[%s1 + $0x4] sm:$0xf]
        %v443 = vld [vmem:[%s1 + $0x8] sm:$0xf]
        %v444 = vld [vmem:[%s1 + $0xc] sm:$0xf]
        %v445 = vld [vmem:[%s2] sm:$0xff]
        %v446 = vld [vmem:[%s2 + $0x8] sm:$0xff]
        %v447 = vld [vmem:[%s2 + $0x10] sm:$0xff]
        %v448 = vld [vmem:[%s2 + $0x18] sm:$0xff]
        %450 = vset.pattern.permute.xlu0 0
        %451 = vperm.xlu0 %450, %v445
        %v452 = vpop.permute.xlu0 %451
        %455 = vset.pattern.permute.xlu0 0
        %456 = vperm.xlu0 %455, %v446
        %v457 = vpop.permute.xlu0 %456
        %460 = vset.pattern.permute.xlu0 0
        %461 = vperm.xlu0 %460, %v447
        %v462 = vpop.permute.xlu0 %461
        %465 = vset.pattern.permute.xlu0 0
        %466 = vperm.xlu0 %465, %v448
        %v467 = vpop.permute.xlu0 %466
        %v473 = vunpack.c.l.b16 %v441
        %v474 = vunpack.c.l.b16 %v442
        %v475 = vunpack.c.l.b16 %v443
        %v476 = vunpack.c.l.b16 %v444
        %v477 = vpack.c.b16 %v474, %v473
        %v478 = vpack.c.b16 %v476, %v475
        %v483 = vunpack.c.l.b16 %v437
        %v484 = vunpack.c.h.b16 %v437
        %v485 = vunpack.c.l.b16 %v438
        %v486 = vunpack.c.h.b16 %v438
        %v487 = vunpack.c.l.b16 %v439
        %v488 = vunpack.c.h.b16 %v439
        %v489 = vunpack.c.l.b16 %v440
        %v490 = vunpack.c.h.b16 %v440
        %v491 = vpack.c.b16 %v485, %v483
        %v492 = vpack.c.b16 %v486, %v484
        %v493 = vpack.c.b16 %v489, %v487
        %v494 = vpack.c.b16 %v490, %v488
        %vm499 = vcmask 261120
        %v501 = vsel %vm499, %v477, 0
        %v504 = vsel %vm499, %v478, 0
        %506 = vmatprep.subr.bf16.mxu0 %v492
        %507 = vmatpush1.bf16.msra.mxu0 %v491
        %508 = vmatprep.subr.bf16.mxu0 %v494
        %509 = vmatpush1.bf16.msra.mxu0 %v493
        %510 = vmatprep.subr.bf16.mxu0 0
        %511 = vmatpush1.bf16.msra.mxu0 0
        %512 = vmatprep.subr.bf16.mxu0 0
        %513 = vmatpush1.bf16.msra.mxu0 0
        %514 = vmatprep.subr.bf16.mxu0 0
        %515 = vmatpush1.bf16.msra.mxu0 0
        %516 = vmatprep.subr.bf16.mxu0 0
        %517 = vmatpush1.bf16.msra.mxu0 0
        %518 = vmatprep.subr.bf16.mxu0 0
        %519 = vmatpush1.bf16.msra.mxu0 0
        %520 = vmatprep.subr.bf16.mxu0 0
        %521 = vmatpush1.bf16.msra.mxu0 0
        %522 = vmatprep.subr.bf16.mxu0 0
        %523 = vmatpush1.bf16.msra.mxu0 0
        %524 = vmatprep.subr.bf16.mxu0 0
        %525 = vmatpush1.bf16.msra.mxu0 0
        %526 = vmatprep.subr.bf16.mxu0 0
        %527 = vmatpush1.bf16.msra.mxu0 0
        %528 = vmatprep.subr.bf16.mxu0 0
        %529 = vmatpush1.bf16.msra.mxu0 0
        %530 = vmatprep.subr.bf16.mxu0 0
        %531 = vmatpush1.bf16.msra.mxu0 0
        %532 = vmatprep.subr.bf16.mxu0 0
        %533 = vmatpush1.bf16.msra.mxu0 0
        %534 = vmatprep.subr.bf16.mxu0 0
        %535 = vmatpush1.bf16.msra.mxu0 0
        %536 = vmatprep.subr.bf16.mxu0 0
        %537 = vmatpush1.bf16.msra.mxu0 0
        %538 = vmatprep.mubr.bf16.mxu0 0
        %539 = vmatmul.mubr.bf16.gmra.mrb[0].mxu0 %v501
        %v540 = vpop.f32.mrb[0].mxu0
        %v541 = vadd.f32 %v452, %v540
        %v542 = vpop.f32.mrb[0].mxu0
        %v543 = vadd.f32 %v452, %v542
        %v544 = vpop.f32.mrb[0].mxu0
        %v545 = vadd.f32 %v457, %v544
        %v546 = vpop.f32.mrb[0].mxu0
        %v547 = vadd.f32 %v457, %v546
        %548 = vmatprep.mubr.bf16.mxu0 0
        %549 = vmatmul.mubr.bf16.gmra.mrb[0].mxu0 %v504
        %v550 = vpop.f32.mrb[0].mxu0
        %v551 = vadd.f32 %v462, %v550
        %v552 = vpop.f32.mrb[0].mxu0
        %v553 = vadd.f32 %v462, %v552
        %v554 = vpop.f32.mrb[0].mxu0
        %v555 = vadd.f32 %v467, %v554
        %v556 = vpop.f32.mrb[0].mxu0
        %v557 = vadd.f32 %v467, %v556
        %558 = vdwg.mxu0
        %v559 = vmax.f32 %v541, 0.0
        %v560 = vmax.f32 %v543, 0.0
        %v561 = vmax.f32 %v545, 0.0
        %v562 = vmax.f32 %v547, 0.0
        %v563 = vmax.f32 %v551, 0.0
        %v564 = vmax.f32 %v553, 0.0
        %v565 = vmax.f32 %v555, 0.0
        %v566 = vmax.f32 %v557, 0.0
        %v567 = vpack.c.bf16 %v561, %v559
        %v568 = vpack.c.bf16 %v562, %v560
        %v569 = vpack.c.bf16 %v565, %v563
        %v570 = vpack.c.bf16 %v566, %v564
        %v571 = vld [vmem:[%s3] sm:$0xf]
        %v572 = vld [vmem:[%s3 + $0x4] sm:$0xf]
        %v573 = vld [vmem:[%s3 + $0x8] sm:$0xf]
        %v574 = vld [vmem:[%s3 + $0xc] sm:$0xf]
        %v575 = vld [vmem:[%s3 + $0x10] sm:$0xf]
        %v576 = vld [vmem:[%s3 + $0x14] sm:$0xf]
        %v577 = vld [vmem:[%s3 + $0x18] sm:$0xf]
        %v578 = vld [vmem:[%s3 + $0x1c] sm:$0xf]
        %v579 = vld [vmem:[%s4] sm:$0xff]
        %v580 = vld [vmem:[%s4 + $0x8] sm:$0xff]
        %v581 = vld [vmem:[%s4 + $0x10] sm:$0xff]
        %v582 = vld [vmem:[%s4 + $0x18] sm:$0xff]
        %v583 = vld [vmem:[%s4 + $0x20] sm:$0xff]
        %v584 = vld [vmem:[%s4 + $0x28] sm:$0xff]
        %v585 = vld [vmem:[%s4 + $0x30] sm:$0xff]
        %v586 = vld [vmem:[%s4 + $0x38] sm:$0xff]
        %588 = vset.pattern.permute.xlu0 0
        %589 = vperm.xlu0 %588, %v579
        %v590 = vpop.permute.xlu0 %589
        %593 = vset.pattern.permute.xlu0 0
        %594 = vperm.xlu0 %593, %v580
        %v595 = vpop.permute.xlu0 %594
        %598 = vset.pattern.permute.xlu0 0
        %599 = vperm.xlu0 %598, %v581
        %v600 = vpop.permute.xlu0 %599
        %603 = vset.pattern.permute.xlu0 0
        %604 = vperm.xlu0 %603, %v582
        %v605 = vpop.permute.xlu0 %604
        %608 = vset.pattern.permute.xlu0 0
        %609 = vperm.xlu0 %608, %v583
        %v610 = vpop.permute.xlu0 %609
        %613 = vset.pattern.permute.xlu0 0
        %614 = vperm.xlu0 %613, %v584
        %v615 = vpop.permute.xlu0 %614
        %618 = vset.pattern.permute.xlu0 0
        %619 = vperm.xlu0 %618, %v585
        %v620 = vpop.permute.xlu0 %619
        %623 = vset.pattern.permute.xlu0 0
        %624 = vperm.xlu0 %623, %v586
        %v625 = vpop.permute.xlu0 %624
        %v635 = vunpack.c.l.b16 %v571
        %v636 = vunpack.c.l.b16 %v572
        %v637 = vunpack.c.l.b16 %v573
        %v638 = vunpack.c.l.b16 %v574
        %v639 = vunpack.c.l.b16 %v575
        %v640 = vunpack.c.l.b16 %v576
        %v641 = vunpack.c.l.b16 %v577
        %v642 = vunpack.c.l.b16 %v578
        %v643 = vpack.c.b16 %v636, %v635
        %v644 = vpack.c.b16 %v638, %v637
        %v645 = vpack.c.b16 %v640, %v639
        %v646 = vpack.c.b16 %v642, %v641
        %v648 = vsel %vm499, %v643, 0
        %v651 = vsel %vm499, %v644, 0
        %v654 = vsel %vm499, %v645, 0
        %v657 = vsel %vm499, %v646, 0
        %659 = vmatprep.subr.bf16.mxu0 %v568
        %660 = vmatpush1.bf16.msra.mxu0 %v567
        %661 = vmatprep.subr.bf16.mxu0 %v570
        %662 = vmatpush1.bf16.msra.mxu0 %v569
        %663 = vmatprep.subr.bf16.mxu0 0
        %664 = vmatpush1.bf16.msra.mxu0 0
        %665 = vmatprep.subr.bf16.mxu0 0
        %666 = vmatpush1.bf16.msra.mxu0 0
        %667 = vmatprep.subr.bf16.mxu0 0
        %668 = vmatpush1.bf16.msra.mxu0 0
        %669 = vmatprep.subr.bf16.mxu0 0
        %670 = vmatpush1.bf16.msra.mxu0 0
        %671 = vmatprep.subr.bf16.mxu0 0
        %672 = vmatpush1.bf16.msra.mxu0 0
        %673 = vmatprep.subr.bf16.mxu0 0
        %674 = vmatpush1.bf16.msra.mxu0 0
        %675 = vmatprep.subr.bf16.mxu0 0
        %676 = vmatpush1.bf16.msra.mxu0 0
        %677 = vmatprep.subr.bf16.mxu0 0
        %678 = vmatpush1.bf16.msra.mxu0 0
        %679 = vmatprep.subr.bf16.mxu0 0
        %680 = vmatpush1.bf16.msra.mxu0 0
        %681 = vmatprep.subr.bf16.mxu0 0
        %682 = vmatpush1.bf16.msra.mxu0 0
        %683 = vmatprep.subr.bf16.mxu0 0
        %684 = vmatpush1.bf16.msra.mxu0 0
        %685 = vmatprep.subr.bf16.mxu0 0
        %686 = vmatpush1.bf16.msra.mxu0 0
        %687 = vmatprep.subr.bf16.mxu0 0
        %688 = vmatpush1.bf16.msra.mxu0 0
        %689 = vmatprep.subr.bf16.mxu0 0
        %690 = vmatpush1.bf16.msra.mxu0 0
        %691 = vmatprep.mubr.bf16.mxu0 0
        %692 = vmatmul.mubr.bf16.gmra.mrb[0].mxu0 %v648
        %v693 = vpop.f32.mrb[0].mxu0
        %v694 = vadd.f32 %v590, %v693
        %v695 = vpop.f32.mrb[0].mxu0
        %v696 = vadd.f32 %v590, %v695
        %v697 = vpop.f32.mrb[0].mxu0
        %v698 = vadd.f32 %v595, %v697
        %v699 = vpop.f32.mrb[0].mxu0
        %v700 = vadd.f32 %v595, %v699
        %701 = vmatprep.mubr.bf16.mxu0 0
        %702 = vmatmul.mubr.bf16.gmra.mrb[0].mxu0 %v651
        %v703 = vpop.f32.mrb[0].mxu0
        %v704 = vadd.f32 %v600, %v703
        %v705 = vpop.f32.mrb[0].mxu0
        %v706 = vadd.f32 %v600, %v705
        %v707 = vpop.f32.mrb[0].mxu0
        %v708 = vadd.f32 %v605, %v707
        %v709 = vpop.f32.mrb[0].mxu0
        %v710 = vadd.f32 %v605, %v709
        %711 = vmatprep.mubr.bf16.mxu0 0
        %712 = vmatmul.mubr.bf16.gmra.mrb[0].mxu0 %v654
        %v713 = vpop.f32.mrb[0].mxu0
        %v714 = vadd.f32 %v610, %v713
        %v715 = vpop.f32.mrb[0].mxu0
        %v716 = vadd.f32 %v610, %v715
        %v717 = vpop.f32.mrb[0].mxu0
        %v718 = vadd.f32 %v615, %v717
        %v719 = vpop.f32.mrb[0].mxu0
        %v720 = vadd.f32 %v615, %v719
        %721 = vmatprep.mubr.bf16.mxu0 0
        %722 = vmatmul.mubr.bf16.gmra.mrb[0].mxu0 %v657
        %v723 = vpop.f32.mrb[0].mxu0
        %v724 = vadd.f32 %v620, %v723
        %v725 = vpop.f32.mrb[0].mxu0
        %v726 = vadd.f32 %v620, %v725
        %v727 = vpop.f32.mrb[0].mxu0
        %v728 = vadd.f32 %v625, %v727
        %v729 = vpop.f32.mrb[0].mxu0
        %v730 = vadd.f32 %v625, %v729
        %731 = vdwg.mxu0
        %v732 = vmax.f32 %v694, 0.0
        %v733 = vmax.f32 %v696, 0.0
        %v734 = vmax.f32 %v698, 0.0
        %v735 = vmax.f32 %v700, 0.0
        %v736 = vmax.f32 %v704, 0.0
        %v737 = vmax.f32 %v706, 0.0
        %v738 = vmax.f32 %v708, 0.0
        %v739 = vmax.f32 %v710, 0.0
        %v740 = vmax.f32 %v714, 0.0
        %v741 = vmax.f32 %v716, 0.0
        %v742 = vmax.f32 %v718, 0.0
        %v743 = vmax.f32 %v720, 0.0
        %v744 = vmax.f32 %v724, 0.0
        %v745 = vmax.f32 %v726, 0.0
        %v746 = vmax.f32 %v728, 0.0
        %v747 = vmax.f32 %v730, 0.0
        %v748 = vpack.c.bf16 %v734, %v732
        %v749 = vpack.c.bf16 %v735, %v733
        %v750 = vpack.c.bf16 %v738, %v736
        %v751 = vpack.c.bf16 %v739, %v737
        %v752 = vpack.c.bf16 %v742, %v740
        %v753 = vpack.c.bf16 %v743, %v741
        %v754 = vpack.c.bf16 %v746, %v744
        %v755 = vpack.c.bf16 %v747, %v745
        %v756 = vld [vmem:[%s5] sm:$0xf]
        %v757 = vld [vmem:[%s5 + $0x4] sm:$0xf]
        %v758 = vld [vmem:[%s5 + $0x8] sm:$0xf]
        %v759 = vld [vmem:[%s5 + $0xc] sm:$0xf]
        %v760 = vld [vmem:[%s5 + $0x10] sm:$0xf]
        %v761 = vld [vmem:[%s5 + $0x14] sm:$0xf]
        %v762 = vld [vmem:[%s5 + $0x18] sm:$0xf]
        %v763 = vld [vmem:[%s5 + $0x1c] sm:$0xf]
        %v764 = vld [vmem:[%s6] sm:$0xff]
        %v765 = vld [vmem:[%s6 + $0x8] sm:$0xff]
        %v766 = vld [vmem:[%s6 + $0x10] sm:$0xff]
        %v767 = vld [vmem:[%s6 + $0x18] sm:$0xff]
        %v768 = vld [vmem:[%s6 + $0x20] sm:$0xff]
        %v769 = vld [vmem:[%s6 + $0x28] sm:$0xff]
        %v770 = vld [vmem:[%s6 + $0x30] sm:$0xff]
        %v771 = vld [vmem:[%s6 + $0x38] sm:$0xff]
        %773 = vset.pattern.permute.xlu0 0
        %774 = vperm.xlu0 %773, %v764
        %v775 = vpop.permute.xlu0 %774
        %778 = vset.pattern.permute.xlu0 0
        %779 = vperm.xlu0 %778, %v765
        %v780 = vpop.permute.xlu0 %779
        %783 = vset.pattern.permute.xlu0 0
        %784 = vperm.xlu0 %783, %v766
        %v785 = vpop.permute.xlu0 %784
        %788 = vset.pattern.permute.xlu0 0
        %789 = vperm.xlu0 %788, %v767
        %v790 = vpop.permute.xlu0 %789
        %793 = vset.pattern.permute.xlu0 0
        %794 = vperm.xlu0 %793, %v768
        %v795 = vpop.permute.xlu0 %794
        %798 = vset.pattern.permute.xlu0 0
        %799 = vperm.xlu0 %798, %v769
        %v800 = vpop.permute.xlu0 %799
        %803 = vset.pattern.permute.xlu0 0
        %804 = vperm.xlu0 %803, %v770
        %v805 = vpop.permute.xlu0 %804
        %808 = vset.pattern.permute.xlu0 0
        %809 = vperm.xlu0 %808, %v771
        %v810 = vpop.permute.xlu0 %809
        %v820 = vunpack.c.l.b16 %v756
        %v821 = vunpack.c.l.b16 %v757
        %v822 = vunpack.c.l.b16 %v758
        %v823 = vunpack.c.l.b16 %v759
        %v824 = vunpack.c.l.b16 %v760
        %v825 = vunpack.c.l.b16 %v761
        %v826 = vunpack.c.l.b16 %v762
        %v827 = vunpack.c.l.b16 %v763
        %v828 = vpack.c.b16 %v821, %v820
        %v829 = vpack.c.b16 %v823, %v822
        %v830 = vpack.c.b16 %v825, %v824
        %v831 = vpack.c.b16 %v827, %v826
        %vm832 = vcmask 523264
        %v834 = vsel %vm832, %v828, 0
        %v837 = vsel %vm832, %v829, 0
        %v840 = vsel %vm832, %v830, 0
        %v843 = vsel %vm832, %v831, 0
        %845 = vmatprep.subr.bf16.mxu0 %v749
        %846 = vmatpush1.bf16.msra.mxu0 %v748
        %847 = vmatprep.subr.bf16.mxu0 %v751
        %848 = vmatpush1.bf16.msra.mxu0 %v750
        %849 = vmatprep.subr.bf16.mxu0 %v753
        %850 = vmatpush1.bf16.msra.mxu0 %v752
        %851 = vmatprep.subr.bf16.mxu0 %v755
        %852 = vmatpush1.bf16.msra.mxu0 %v754
        %853 = vmatprep.subr.bf16.mxu0 0
        %854 = vmatpush1.bf16.msra.mxu0 0
        %855 = vmatprep.subr.bf16.mxu0 0
        %856 = vmatpush1.bf16.msra.mxu0 0
        %857 = vmatprep.subr.bf16.mxu0 0
        %858 = vmatpush1.bf16.msra.mxu0 0
        %859 = vmatprep.subr.bf16.mxu0 0
        %860 = vmatpush1.bf16.msra.mxu0 0
        %861 = vmatprep.subr.bf16.mxu0 0
        %862 = vmatpush1.bf16.msra.mxu0 0
        %863 = vmatprep.subr.bf16.mxu0 0
        %864 = vmatpush1.bf16.msra.mxu0 0
        %865 = vmatprep.subr.bf16.mxu0 0
        %866 = vmatpush1.bf16.msra.mxu0 0
        %867 = vmatprep.subr.bf16.mxu0 0
        %868 = vmatpush1.bf16.msra.mxu0 0
        %869 = vmatprep.subr.bf16.mxu0 0
        %870 = vmatpush1.bf16.msra.mxu0 0
        %871 = vmatprep.subr.bf16.mxu0 0
        %872 = vmatpush1.bf16.msra.mxu0 0
        %873 = vmatprep.subr.bf16.mxu0 0
        %874 = vmatpush1.bf16.msra.mxu0 0
        %875 = vmatprep.subr.bf16.mxu0 0
        %876 = vmatpush1.bf16.msra.mxu0 0
        %877 = vmatprep.mubr.bf16.mxu0 0
        %878 = vmatmul.mubr.bf16.gmra.mrb[0].mxu0 %v834
        %v879 = vpop.f32.mrb[0].mxu0
        %v880 = vadd.f32 %v775, %v879
        %v881 = vpop.f32.mrb[0].mxu0
        %v882 = vadd.f32 %v775, %v881
        %v883 = vpop.f32.mrb[0].mxu0
        %v884 = vadd.f32 %v780, %v883
        %v885 = vpop.f32.mrb[0].mxu0
        %v886 = vadd.f32 %v780, %v885
        %887 = vmatprep.mubr.bf16.mxu0 0
        %888 = vmatmul.mubr.bf16.gmra.mrb[0].mxu0 %v837
        %v889 = vpop.f32.mrb[0].mxu0
        %v890 = vadd.f32 %v785, %v889
        %v891 = vpop.f32.mrb[0].mxu0
        %v892 = vadd.f32 %v785, %v891
        %v893 = vpop.f32.mrb[0].mxu0
        %v894 = vadd.f32 %v790, %v893
        %v895 = vpop.f32.mrb[0].mxu0
        %v896 = vadd.f32 %v790, %v895
        %897 = vmatprep.mubr.bf16.mxu0 0
        %898 = vmatmul.mubr.bf16.gmra.mrb[0].mxu0 %v840
        %v899 = vpop.f32.mrb[0].mxu0
        %v900 = vadd.f32 %v795, %v899
        %v901 = vpop.f32.mrb[0].mxu0
        %v902 = vadd.f32 %v795, %v901
        %v903 = vpop.f32.mrb[0].mxu0
        %v904 = vadd.f32 %v800, %v903
        %v905 = vpop.f32.mrb[0].mxu0
        %v906 = vadd.f32 %v800, %v905
        %907 = vmatprep.mubr.bf16.mxu0 0
        %908 = vmatmul.mubr.bf16.gmra.mrb[0].mxu0 %v843
        %v909 = vpop.f32.mrb[0].mxu0
        %v910 = vadd.f32 %v805, %v909
        %v911 = vpop.f32.mrb[0].mxu0
        %v912 = vadd.f32 %v805, %v911
        %v913 = vpop.f32.mrb[0].mxu0
        %v914 = vadd.f32 %v810, %v913
        %v915 = vpop.f32.mrb[0].mxu0
        %v916 = vadd.f32 %v810, %v915
        %917 = vdwg.mxu0
        %v918 = vmax.f32 %v880, 0.0
        %v919 = vmax.f32 %v882, 0.0
        %v920 = vmax.f32 %v884, 0.0
        %v921 = vmax.f32 %v886, 0.0
        %v922 = vmax.f32 %v890, 0.0
        %v923 = vmax.f32 %v892, 0.0
        %v924 = vmax.f32 %v894, 0.0
        %v925 = vmax.f32 %v896, 0.0
        %v926 = vmax.f32 %v900, 0.0
        %v927 = vmax.f32 %v902, 0.0
        %v928 = vmax.f32 %v904, 0.0
        %v929 = vmax.f32 %v906, 0.0
        %v930 = vmax.f32 %v910, 0.0
        %v931 = vmax.f32 %v912, 0.0
        %v932 = vmax.f32 %v914, 0.0
        %v933 = vmax.f32 %v916, 0.0
        %v934 = vpack.c.bf16 %v920, %v918
        %v935 = vpack.c.bf16 %v921, %v919
        %v936 = vpack.c.bf16 %v924, %v922
        %v937 = vpack.c.bf16 %v925, %v923
        %v938 = vpack.c.bf16 %v928, %v926
        %v939 = vpack.c.bf16 %v929, %v927
        %v940 = vpack.c.bf16 %v932, %v930
        %v941 = vpack.c.bf16 %v933, %v931
        %v942 = vld [vmem:[%s7] sm:$0xf]
        %v943 = vld [vmem:[%s7 + $0x4] sm:$0xf]
        %v944 = vld [vmem:[%s7 + $0x8] sm:$0xf]
        %v945 = vld [vmem:[%s7 + $0xc] sm:$0xf]
        %v946 = vld [vmem:[%s8] sm:$0xff]
        %v947 = vld [vmem:[%s8 + $0x8] sm:$0xff]
        %v948 = vld [vmem:[%s8 + $0x10] sm:$0xff]
        %v949 = vld [vmem:[%s8 + $0x18] sm:$0xff]
        %951 = vset.pattern.permute.xlu0 0
        %952 = vperm.xlu0 %951, %v946
        %v953 = vpop.permute.xlu0 %952
        %956 = vset.pattern.permute.xlu0 0
        %957 = vperm.xlu0 %956, %v947
        %v958 = vpop.permute.xlu0 %957
        %961 = vset.pattern.permute.xlu0 0
        %962 = vperm.xlu0 %961, %v948
        %v963 = vpop.permute.xlu0 %962
        %966 = vset.pattern.permute.xlu0 0
        %967 = vperm.xlu0 %966, %v949
        %v968 = vpop.permute.xlu0 %967
        %v974 = vunpack.c.l.b16 %v942
        %v975 = vunpack.c.l.b16 %v943
        %v976 = vunpack.c.l.b16 %v944
        %v977 = vunpack.c.l.b16 %v945
        %v978 = vpack.c.b16 %v975, %v974
        %v979 = vpack.c.b16 %v977, %v976
        %v981 = vsel %vm832, %v978, 0
        %v984 = vsel %vm832, %v979, 0
        %986 = vmatprep.subr.bf16.mxu0 %v935
        %987 = vmatpush1.bf16.msra.mxu0 %v934
        %988 = vmatprep.subr.bf16.mxu0 %v937
        %989 = vmatpush1.bf16.msra.mxu0 %v936
        %990 = vmatprep.subr.bf16.mxu0 %v939
        %991 = vmatpush1.bf16.msra.mxu0 %v938
        %992 = vmatprep.subr.bf16.mxu0 %v941
        %993 = vmatpush1.bf16.msra.mxu0 %v940
        %994 = vmatprep.subr.bf16.mxu0 0
        %995 = vmatpush1.bf16.msra.mxu0 0
        %996 = vmatprep.subr.bf16.mxu0 0
        %997 = vmatpush1.bf16.msra.mxu0 0
        %998 = vmatprep.subr.bf16.mxu0 0
        %999 = vmatpush1.bf16.msra.mxu0 0
        %1000 = vmatprep.subr.bf16.mxu0 0
        %1001 = vmatpush1.bf16.msra.mxu0 0
        %1002 = vmatprep.subr.bf16.mxu0 0
        %1003 = vmatpush1.bf16.msra.mxu0 0
        %1004 = vmatprep.subr.bf16.mxu0 0
        %1005 = vmatpush1.bf16.msra.mxu0 0
        %1006 = vmatprep.subr.bf16.mxu0 0
        %1007 = vmatpush1.bf16.msra.mxu0 0
        %1008 = vmatprep.subr.bf16.mxu0 0
        %1009 = vmatpush1.bf16.msra.mxu0 0
        %1010 = vmatprep.subr.bf16.mxu0 0
        %1011 = vmatpush1.bf16.msra.mxu0 0
        %1012 = vmatprep.subr.bf16.mxu0 0
        %1013 = vmatpush1.bf16.msra.mxu0 0
        %1014 = vmatprep.subr.bf16.mxu0 0
        %1015 = vmatpush1.bf16.msra.mxu0 0
        %1016 = vmatprep.subr.bf16.mxu0 0
        %1017 = vmatpush1.bf16.msra.mxu0 0
        %1018 = vmatprep.mubr.bf16.mxu0 0
        %1019 = vmatmul.mubr.bf16.gmra.mrb[0].mxu0 %v981
        %v1020 = vpop.f32.mrb[0].mxu0
        %v1021 = vadd.f32 %v953, %v1020
        %v1022 = vpop.f32.mrb[0].mxu0
        %v1023 = vadd.f32 %v953, %v1022
        %v1024 = vpop.f32.mrb[0].mxu0
        %v1025 = vadd.f32 %v958, %v1024
        %v1026 = vpop.f32.mrb[0].mxu0
        %v1027 = vadd.f32 %v958, %v1026
        %1028 = vmatprep.mubr.bf16.mxu0 0
        %1029 = vmatmul.mubr.bf16.gmra.mrb[0].mxu0 %v984
        %v1030 = vpop.f32.mrb[0].mxu0
        %v1031 = vadd.f32 %v963, %v1030
        %v1032 = vpop.f32.mrb[0].mxu0
        %v1033 = vadd.f32 %v963, %v1032
        %v1034 = vpop.f32.mrb[0].mxu0
        %v1035 = vadd.f32 %v968, %v1034
        %v1036 = vpop.f32.mrb[0].mxu0
        %v1037 = vadd.f32 %v968, %v1036
        %1038 = vdwg.mxu0
        %v1039 = vmax.f32 %v1021, 0.0
        %v1040 = vmax.f32 %v1023, 0.0
        %v1041 = vmax.f32 %v1025, 0.0
        %v1042 = vmax.f32 %v1027, 0.0
        %v1043 = vmax.f32 %v1031, 0.0
        %v1044 = vmax.f32 %v1033, 0.0
        %v1045 = vmax.f32 %v1035, 0.0
        %v1046 = vmax.f32 %v1037, 0.0
        %v1047 = vpack.c.bf16 %v1041, %v1039
        %v1048 = vpack.c.bf16 %v1042, %v1040
        %v1049 = vpack.c.bf16 %v1045, %v1043
        %v1050 = vpack.c.bf16 %v1046, %v1044
        %v1051 = vunpack.c.l.bf16 %v1047
        %v1052 = vunpack.c.l.bf16 %v1048
        %v1053 = vunpack.c.h.bf16 %v1047
        %v1054 = vunpack.c.h.bf16 %v1048
        %v1055 = vunpack.c.l.bf16 %v1049
        %v1056 = vunpack.c.l.bf16 %v1050
        %v1057 = vunpack.c.h.bf16 %v1049
        %v1058 = vunpack.c.h.bf16 %v1050
        %v1059 = vld [vmem:[%s9] sm:$0xff]
        %v1060 = vld [vmem:[%s9 + $0x8] sm:$0xff]
        %v1061 = vld [vmem:[%s9 + $0x10] sm:$0xff]
        %v1062 = vld [vmem:[%s9 + $0x18] sm:$0xff]
        %1064 = vset.pattern.permute.xlu0 0
        %1065 = vperm.xlu0 %1064, %v1059
        %v1066 = vpop.permute.xlu0 %1065
        %1069 = vset.pattern.permute.xlu0 0
        %1070 = vperm.xlu0 %1069, %v1060
        %v1071 = vpop.permute.xlu0 %1070
        %1074 = vset.pattern.permute.xlu0 0
        %1075 = vperm.xlu0 %1074, %v1061
        %v1076 = vpop.permute.xlu0 %1075
        %1079 = vset.pattern.permute.xlu0 0
        %1080 = vperm.xlu0 %1079, %v1062
        %v1081 = vpop.permute.xlu0 %1080
        %v1083 = vmul.f32 %v1051, %v1066
        %v1084 = vmul.f32 %v1052, %v1066
        %v1085 = vmul.f32 %v1053, %v1071
        %v1086 = vmul.f32 %v1054, %v1071
        %v1087 = vmul.f32 %v1055, %v1076
        %v1088 = vmul.f32 %v1056, %v1076
        %v1089 = vmul.f32 %v1057, %v1081
        %v1090 = vmul.f32 %v1058, %v1081
        %v1091 = vadd.f32 %v1083, %v1085
        %v1092 = vadd.f32 %v1091, %v1087
        %v1093 = vadd.f32 %v1092, %v1089
        %v1094 = vrot.slane %v1093, 4
        %v1095 = vadd.f32 %v1093, %v1094
        %v1096 = vrot.slane %v1095, 2
        %v1097 = vadd.f32 %v1095, %v1096
        %v1098 = vrot.slane %v1097, 1
        %v1099 = vadd.f32 %v1097, %v1098
        %v1100 = vadd.f32 %v1084, %v1086
        %v1101 = vadd.f32 %v1100, %v1088
        %v1102 = vadd.f32 %v1101, %v1090
        %v1103 = vrot.slane %v1102, 4
        %v1104 = vadd.f32 %v1102, %v1103
        %v1105 = vrot.slane %v1104, 2
        %v1106 = vadd.f32 %v1104, %v1105
        %v1107 = vrot.slane %v1106, 1
        %v1108 = vadd.f32 %v1106, %v1107
        %v1109 = vld [vmem:[#allocation2] sm:$0x1]
        %1111 = vset.pattern.permute.xlu0 0
        %1112 = vperm.xlu0 %1111, %v1109
        %v1113 = vpop.permute.xlu0 %1112
        %v1115 = vlaneseq
        %v1116 = vshrl.u32 %v1115, 7
        %v1117 = vsub.s32 0, %v1116
        %v1118 = vrot.slane %v1113, %v1117
        %v1119 = vadd.f32 %v1099, %v1118
        %v1120 = vadd.f32 %v1108, %v1118
        %v1123 = vcombine.low %v1119, %v1120
        %v1125 = vunpack.c.l.s4 1966171168
        %v1126 = vunpack.c.0.s8 %v1125
        %v1127 = vlaneseq
        %v1128 = vshrl.u32 %v1127, 7
        %v1129 = vsub.s32 %v1126, %v1128
        %v1130 = vrot.slane %v1123, %v1129
        %v1132 = vunpack.c.l.s4 1966171168
        %v1133 = vunpack.c.0.s8 %v1132
        %v1134 = vlaneseq
        %v1135 = vshrl.u32 %v1134, 7
        %v1136 = vsub.s32 %v1133, %v1135
        %v1137 = vrot.slane %v1130, %v1136
        %v1139 = vlaneseq
        %vm1140 = vcmp.ge.s32.totalorder %v1139, 0
        %vm1141 = vcmp.lt.s32.totalorder %v1139, 256
        %vm1142 = vmand %vm1140, %vm1141
        %1143 = vst.msk [vmem:[%s433] sm:$0x3] %vm1142, %v1137
        %s1144 = sand.u32 %s271, 1
        %s1145 = scalar_lea.sflag [#allocation5], %s1144
        %s1146 = sand.u32 %s271, 1
        %s1147 = smul.addr %s1146, 2
        %s1148 = scalar_lea.vmem [#allocation4], %s1147
        // Predicated region
        $region103: #{tpu_custom_call.1} parent=97 // pred_check
          %p1149 = pneg %p281
        $region104: #{tpu_custom_call.1} parent=97 // pred_check_branch
          %1151 = sbr.rel (%p1149) target = $region106
        $region105: #{tpu_custom_call.1} parent=97 // pred_region
          %s1152 = smul.u32 2, %s27
          %s1154 = ssub.s32 32, 32
          %1155 = vsyncadd %s1145, %s1154
          %s1156 = smul.addr %s1152, 16
          %s1157 = scalar_lea.hbm %s11, %s1156
          %s1159 = sshll.u32 %s1148, 4
          %s1160 = int_to_ptr.vmem [resolvable:$true] %s1159
          %1162 = dma.vmem_to_hbm [thread:$0]  %s1160, 32, %s1157, %s1145
        $region106: #{tpu_custom_call.1} parent=97 // pred_fallthru
          _
      $region98: #{tpu_custom_call.1} parent=5 // pred_fallthru
        _
      %p1163 = scmp.le.s32.totalorder 2, %s22
      // Predicated region
      $region107: #{tpu_custom_call.1} parent=5 // pred_check
        %p1164 = pneg %p1163
      $region108: #{tpu_custom_call.1} parent=5 // pred_check_branch
        %1166 = sbr.rel (%p1164) target = $region110
      $region109: #{tpu_custom_call.1} parent=5 // pred_region
        %s1167 = ssub.s32 %s22, 2
        // Predicated region
        $region111: #{tpu_custom_call.1} parent=109 // pred_check
          %p1168 = pneg %p287
        $region112: #{tpu_custom_call.1} parent=109 // pred_check_branch
          %1170 = sbr.rel (%p1168) target = $region114
        $region113: #{tpu_custom_call.1} parent=109 // pred_region
          %s1171 = sand.u32 %s272, 1
          %s1172 = scalar_lea.sflag [#allocation5], %s1171
          %s1173 = sand.u32 %s272, 1
          %s1174 = smul.addr %s1173, 2
          %s1175 = scalar_lea.vmem [#allocation4], %s1174
          %1176 = dma.done %s1172, 32
        $region114: #{tpu_custom_call.1} parent=109 // pred_fallthru
          _
      $region110: #{tpu_custom_call.1} parent=5 // pred_fallthru
        _
    $region6: #{tpu_custom_call.1} parent=1 // loop_footer
      %s26 = sadd.s32 1, %s22
    $region7: #{tpu_custom_call.1} parent=1 // loop_footer_branch
      %21 = sbr.rel target = $region3
    $region8: #{tpu_custom_call.1} parent=1 // loop_exit
      _
    %1177 = vsyncpa [#allocation5], 1
    %s1178 = scalar_lea.sflag [#allocation5], 1
    %1179 = vsyncpa %s1178, 1

</llo_original>
